<compile_context>
chip_gen: v5e
topology: v5e:2x2
jax: 0.10.0
libtpu: 0.0.40
codegen_flags: <defaults>
</compile_context>

<pallas_src>
import functools

import jax
import jax.numpy as jnp
from jax.experimental import pallas as pl
from jax.experimental.pallas import tpu as pltpu


# ---------------------------------------------------------------------------
# kernel
# ---------------------------------------------------------------------------
def _ce_partial_kernel(pred_ref, label_ref, out_ref, *, n_valid, tile_n, needs_mask):
    # pred_ref:  (TILE_N, C) logits tile (native wire dtype) in VMEM
    # label_ref: (TILE_N, 1) int32 labels tile in VMEM
    # out_ref:   (1, 8, 128) f32 — per-tile partial sum, broadcast (dense store)
    x = pred_ref[...]                                            # (TILE_N, C), native dtype
    lbl = label_ref[...]                                         # (TILE_N, 1)

    # max pass and picked-logit pass run at native (bf16) vreg density;
    # both are exact for bf16 data (max / select / sum-of-one-nonzero).
    m = jnp.max(x, axis=-1, keepdims=True)                       # (TILE_N, 1)
    col = jax.lax.broadcasted_iota(jnp.int32, x.shape, 1)        # (TILE_N, C)
    picked = jnp.sum(jnp.where(col == lbl, x, jnp.zeros_like(x)),
                     axis=-1, keepdims=True)                     # (TILE_N, 1)

    # exp-sum pass in f32; single-use f32 cast fuses into the exp chain.
    m_f32 = m.astype(jnp.float32)
    s = jnp.sum(jnp.exp(x.astype(jnp.float32) - m_f32),
                axis=-1, keepdims=True)                          # (TILE_N, 1) f32
    per_sample = (jnp.log(s) + m_f32) - picked.astype(jnp.float32)

    if needs_mask:  # static: only emitted when the last row-block is ragged
        row = pl.program_id(0) * tile_n + jax.lax.broadcasted_iota(
            jnp.int32, per_sample.shape, 0)
        # select: garbage/NaN from the OOB tail does not propagate
        per_sample = jnp.where(row < n_valid, per_sample, 0.0)

    out_ref[...] = jnp.broadcast_to(jnp.sum(per_sample), out_ref.shape)


# ---------------------------------------------------------------------------
# tiling / VMEM budgeting
# ---------------------------------------------------------------------------
_MAX_TILE_ROWS = 16384


def _vmem_caps():
    """(vmem_limit_bytes, per-step footprint budget) — per TPU generation."""
    try:
        kind = jax.devices()[0].device_kind.lower()
    except Exception:
        kind = ""
    if any(t in kind for t in ("v4", "v5", "v6")):
        # 128 MiB physical VMEM: raise the scoped limit and grow tiles
        return 96 * 1024 * 1024, 80 * 1024 * 1024
    # v7x (64 MiB per TC) and unknown generations: stay conservative
    return 48 * 1024 * 1024, 40 * 1024 * 1024


def _row_bytes(c, itemsize):
    # Per-row VMEM footprint of one grid step:
    #   2x double-buffered logits tile (wire dtype)
    # + ~2x tile of f32 live intermediates (exp chain / reduce temps; also
    #   covers the implicit bf16->f32 upcast on v5e)
    # + 2x lane-padded (tile_n, 1) -> (tile_n, 128) int32 label buffers
    return 2 * c * itemsize + 2 * c * 4 + 2 * 128 * 4


def _pick_tile_n(n, c, itemsize, footprint_budget):
    t = footprint_budget // _row_bytes(c, itemsize)
    t = int(min(_MAX_TILE_ROWS, t))
    t -= t % 8
    if t < 8:
        return None  # vocab-scale C: even an 8-row tile blows the budget
    if t >= n:
        # One tile would cover everything. Split into two so the "parallel"
        # grid axis can shard across both TensorCores on v7x (the extra grid
        # step is ~free on v5e/v6e).
        if n >= 16:
            t = max(8, ((-(-n // 2) + 7) // 8) * 8)
        else:
            t = max(8, ((n + 7) // 8) * 8)
    return t


# ---------------------------------------------------------------------------
# wrappers
# ---------------------------------------------------------------------------
def dropout_loss_pallas(pred: jax.Array, label: jax.Array, *, tile_n,
                        vmem_limit_bytes) -> jax.Array:
    n, c = pred.shape
    tile_n = max(8, (int(tile_n) // 8) * 8)
    num_tiles = -(-n // tile_n)
    needs_mask = (num_tiles * tile_n != n)   # ragged last block — no host pad

    label2d = label.astype(jnp.int32).reshape(n, 1)

    kernel = functools.partial(
        _ce_partial_kernel, n_valid=n, tile_n=tile_n, needs_mask=needs_mask)

    partials = pl.pallas_call(
        kernel,
        out_shape=jax.ShapeDtypeStruct((num_tiles, 8, 128), jnp.float32),
        grid=(num_tiles,),
        in_specs=[
            pl.BlockSpec((tile_n, c), lambda i: (i, 0)),
            pl.BlockSpec((tile_n, 1), lambda i: (i, 0)),
        ],
        out_specs=pl.BlockSpec((1, 8, 128), lambda i: (i, 0, 0)),
        compiler_params=pltpu.CompilerParams(
            dimension_semantics=("parallel",),       # shards across TCs on v7x
            vmem_limit_bytes=vmem_limit_bytes,
        ),
    )(pred, label2d)

    # Contiguous full-block sum (no strided [:,0,0] gather); each per-tile sum
    # was broadcast across 8*128 = 1024 slots, so rescale by an exact power of 2.
    return jnp.sum(partials) * (1.0 / 1024.0) / n


def _reference_ce(pred, label):
    # pure-JAX reference (also used directly for tiny / vocab-scale inputs)
    x = pred.astype(jnp.float32)
    logz = jax.scipy.special.logsumexp(x, axis=-1)
    picked = jnp.take_along_axis(x, label[:, None].astype(jnp.int32), axis=-1)[:, 0]
    return jnp.mean(logz - picked)


_PALLAS_MIN_BYTES = 256 * 1024  # below this, XLA-fused logsumexp wins


def dropout_loss(pred: jax.Array, label: jax.Array, *, use_pallas=None,
                 tile_n=None) -> jax.Array:
    """CrossEntropyLoss(pred, label).mean() — the epoch<5 path of DropoutLoss."""
    n, c = pred.shape
    itemsize = jnp.dtype(pred.dtype).itemsize
    if use_pallas is None:
        use_pallas = n * c * itemsize >= _PALLAS_MIN_BYTES

    vmem_limit, footprint_budget = _vmem_caps()
    if tile_n is None:
        tile_n = _pick_tile_n(n, c, itemsize, footprint_budget)

    if not use_pallas or tile_n is None:
        # TODO(synk): vocab-scale C needs class-axis tiling with an online LSE;
        #             until then fall back to the XLA path instead of spilling.
        return _reference_ce(pred, label)
    return dropout_loss_pallas(pred, label, tile_n=tile_n,
                               vmem_limit_bytes=vmem_limit)


# ---------------------------------------------------------------------------
# self-test
# ---------------------------------------------------------------------------
if __name__ == "__main__":
    key = jax.random.PRNGKey(0)
    k1, k2, k3, k4, k5, k6 = jax.random.split(key, 6)

    # 1) tiny debug config (batch=8, output_num=32 classes), forced through kernel
    N, C = 8, 32
    pred = jax.random.normal(k1, (N, C), dtype=jnp.float32)
    label = jax.random.randint(k2, (N,), 0, C, dtype=jnp.int32)
    loss = dropout_loss(pred, label, use_pallas=True)
    jax.block_until_ready(loss)
    ref = _reference_ce(pred, label)
    assert jnp.allclose(loss, ref, atol=1e-5, rtol=1e-5), (loss, ref)

    # 2) ragged last block: N not a multiple of tile_n -> in-kernel mask, no pad
    N, C = 272, 128
    pred = jax.random.normal(k3, (N, C), dtype=jnp.float32)
    label = jax.random.randint(k4, (N,), 0, C, dtype=jnp.int32)
    loss = dropout_loss(pred, label, use_pallas=True, tile_n=128)
    jax.block_until_ready(loss)
    ref = _reference_ce(pred, label)
    assert jnp.allclose(loss, ref, atol=1e-5, rtol=1e-5), (loss, ref)

    # 2b) auto tile selection on the same data (splits into 2 parallel tiles)
    loss = dropout_loss(pred, label, use_pallas=True)
    jax.block_until_ready(loss)
    assert jnp.allclose(loss, ref, atol=1e-5, rtol=1e-5), (loss, ref)

    # 3) bf16 logits on the wire (half the HBM traffic), f32 exp-sum in-kernel
    N, C = 64, 128
    pred = jax.random.normal(k5, (N, C), dtype=jnp.float32).astype(jnp.bfloat16)
    label = jax.random.randint(k6, (N,), 0, C, dtype=jnp.int32)
    loss = dropout_loss(pred, label, use_pallas=True)
    jax.block_until_ready(loss)
    ref = _reference_ce(pred, label)
    assert jnp.allclose(loss, ref, atol=1e-4, rtol=1e-4), (loss, ref)

    print("KERNEL_OK")
</pallas_src>

<mosaic_0001>
module attributes {stable_mosaic.version = 11 : i64} {
  func.func @_ce_partial_kernel(%arg0: i32, %arg1: memref<8x32xf32, #tpu.memory_space<vmem>>, %arg2: memref<8x1xi32, #tpu.memory_space<vmem>>, %arg3: memref<1x8x128xf32, #tpu.memory_space<vmem>>) attributes {dimension_semantics = [#tpu.dimension_semantics<parallel>], iteration_bounds = array<i64: 1>, scalar_prefetch = 0 : i64, scratch_operands = 0 : i64, tpu.core_type = #tpu.core_type<tc>, window_params = [{transform_indices = @transform_0, window_bounds = array<i64: 8, 32>}, {transform_indices = @transform_1, window_bounds = array<i64: 8, 1>}, {transform_indices = @transform_2, window_bounds = array<i64: 1, 8, 128>}]} {
    %c0 = arith.constant 0 : index
    %c0_0 = arith.constant 0 : index
    %0 = vector.load %arg1[%c0, %c0_0] : memref<8x32xf32, #tpu.memory_space<vmem>>, vector<8x32xf32>
    %c0_1 = arith.constant 0 : index
    %c0_2 = arith.constant 0 : index
    %1 = vector.load %arg2[%c0_1, %c0_2] : memref<8x1xi32, #tpu.memory_space<vmem>>, vector<8x1xi32>
    %cst = arith.constant dense<0xFF800000> : vector<8xf32>
    %2 = vector.multi_reduction <maximumf>, %0, %cst [1] : vector<8x32xf32> to vector<8xf32>
    %3 = vector.shape_cast %2 : vector<8xf32> to vector<8x1xf32>
    %4 = tpu.iota {dimensions = array<i32: 1>} : vector<8x32xi32>
    %5 = vector.broadcast %1 : vector<8x1xi32> to vector<8x32xi32>
    %6 = arith.cmpi eq, %4, %5 : vector<8x32xi32>
    %cst_3 = arith.constant 0.000000e+00 : f32
    %7 = vector.broadcast %cst_3 : f32 to vector<8x32xf32>
    %8 = arith.select %6, %0, %7 : vector<8x32xi1>, vector<8x32xf32>
    %cst_4 = arith.constant dense<0.000000e+00> : vector<8xf32>
    %9 = vector.multi_reduction <add>, %8, %cst_4 [1] : vector<8x32xf32> to vector<8xf32>
    %10 = vector.shape_cast %9 : vector<8xf32> to vector<8x1xf32>
    %11 = vector.broadcast %3 : vector<8x1xf32> to vector<8x32xf32>
    %12 = arith.subf %0, %11 : vector<8x32xf32>
    %13 = math.exp %12 : vector<8x32xf32>
    %cst_5 = arith.constant dense<0.000000e+00> : vector<8xf32>
    %14 = vector.multi_reduction <add>, %13, %cst_5 [1] : vector<8x32xf32> to vector<8xf32>
    %15 = vector.shape_cast %14 : vector<8xf32> to vector<8x1xf32>
    %16 = math.log %15 : vector<8x1xf32>
    %17 = arith.addf %16, %3 : vector<8x1xf32>
    %18 = arith.subf %17, %10 : vector<8x1xf32>
    %19 = vector.shape_cast %18 : vector<8x1xf32> to vector<1x8x1xf32>
    %cst_6 = arith.constant dense<0.000000e+00> : vector<1xf32>
    %20 = vector.multi_reduction <add>, %19, %cst_6 [1, 2] : vector<1x8x1xf32> to vector<1xf32>
    %21 = vector.shape_cast %20 : vector<1xf32> to vector<1x1x1xf32>
    %22 = vector.extract %21[0, 0, 0] : f32 from vector<1x1x1xf32>
    %23 = vector.broadcast %22 : f32 to vector<1x8x128xf32>
    %c0_7 = arith.constant 0 : index
    %c0_8 = arith.constant 0 : index
    %c0_9 = arith.constant 0 : index
    %24 = vector.load %arg3[%c0_7, %c0_8, %c0_9] : memref<1x8x128xf32, #tpu.memory_space<vmem>>, vector<1x8x128xf32>
    tpu.vector_store %arg3[%c0_7, %c0_8, %c0_9], %23 {strides = array<i32>} : memref<1x8x128xf32, #tpu.memory_space<vmem>>, vector<1x8x128xf32>,
    return
  }
  func.func @transform_0(%arg0: i32) -> (i32, i32) {
    %c0_i32 = arith.constant 0 : i32
    %c0_i32_0 = arith.constant 0 : i32
    return %arg0, %c0_i32 : i32, i32
  }
  func.func @transform_1(%arg0: i32) -> (i32, i32) {
    %c0_i32 = arith.constant 0 : i32
    %c0_i32_0 = arith.constant 0 : i32
    return %arg0, %c0_i32 : i32, i32
  }
  func.func @transform_2(%arg0: i32) -> (i32, i32, i32) {
    %c0_i32 = arith.constant 0 : i32
    %c0_i32_0 = arith.constant 0 : i32
    %c0_i32_1 = arith.constant 0 : i32
    return %arg0, %c0_i32, %c0_i32_0 : i32, i32, i32
  }
}

</mosaic_0001>

<llo_original>
// kernel: tpu_custom_call.1
$region0: #{tpu_custom_call.1}
  #allocation0 [shape = 'u32[]', space=smem, size = 0x4, offset = 0x4, fixed_abs, tag = 'smem constant byte address 0x4 - core index']
  #allocation1 [shape = 'u32[72,128]{1,0:T(1,128)}', space=vmem, size = 0x9000, scoped, tag = 'internal scratch']
  %s0 = inlined_call_operand.vmem [shape: f32[8,32], index: 0, kind: input, shape index: {}]
  %s1 = inlined_call_operand.vmem [shape: s32[8,1], index: 1, kind: input, shape index: {}]
  %s2 = inlined_call_operand.hbm [shape: f32[1,8,128], index: 2, kind: output, shape index: {}]
  %s3 = sld [smem:[#allocation0]]
  $region18: #{tpu_custom_call.1} parent=0
    _
  %s5 = ssub.s32 1, %s3
  %s6 = scalar_select 0, %s5, %s3
  $region1: #{tpu_custom_call.1} parent=0
    #allocation2 [shape = 'u8[4096]{0}', space=vmem, size = 0x1000, scoped, tag = 'output window, operand 0, single buffered']
    #allocation3 [shape = 's32[1]{0}', space=sflag, size = 0x4, scoped, tag = 'scoped memory for tpu_custom_call.1']
    %7 = vsyncpa [#allocation3], 0
    // Predicated region
    $region2: #{tpu_custom_call.1} parent=1 // pred_check
      _
    $region3: #{tpu_custom_call.1} parent=1 // pred_check_branch
      %9 = sbr.rel (0) target = $region5
    $region4: #{tpu_custom_call.1} parent=1 // pred_region
      _
    $region5: #{tpu_custom_call.1} parent=1 // pred_fallthru
      _
    // Predicated region
    $region6: #{tpu_custom_call.1} parent=1 // pred_check
      _
    $region7: #{tpu_custom_call.1} parent=1 // pred_check_branch
      %11 = sbr.rel (0) target = $region9
    $region8: #{tpu_custom_call.1} parent=1 // pred_region
      _
    $region9: #{tpu_custom_call.1} parent=1 // pred_fallthru
      _
    %v12 = vld [vmem:[%s0] sm:$0xff]
    %v13 = vld [vmem:[%s1] sm:$0xff]
    %vm14 = vcmask 261120
    %v15 = vsel %vm14, %v12, -inf
    %16 = vmax.xlane.f32.xlu0 %v15
    %v17 = vpop.xlane.xlu0 %16
    %v18 = vlaneseq
    %v19 = vand.u32 %v18, 127
    %20 = vset.pattern.permute.xlu0 0
    %21 = vperm.xlu0 %20, %v13
    %v22 = vpop.permute.xlu0 %21
    %vm23 = vcmp.eq.s32.totalorder %v19, %v22
    %v24 = vsel %vm23, %v12, 0.0
    %v25 = vsel %vm14, %v24, 0.0
    %26 = vadd.xlane.f32.xlu0 %v25
    %v27 = vpop.xlane.xlu0 %26
    %v28 = vsub.f32 %v12, %v17
    %v29 = vmul.f32 %v28, 1.442695
    %v30 = vpow.pop %v29
    %v31 = vsel %vm14, %v30, 0.0
    %32 = vadd.xlane.f32.xlu0 %v31
    %v33 = vpop.xlane.xlu0 %32
    %v34 = vlog2.pop %v33
    %v35 = vmul.f32 %v34, 0.6931472
    %v36 = vadd.f32 %v35, %v17
    %v37 = vsub.f32 %v36, %v27
    %vm38 = vcmask 7168
    %v39 = vsel %vm38, %v37, 0.0
    %40 = vadd.xlane.f32.xlu0 %v39
    %v41 = vpop.xlane.xlu0 %40
    %v42 = vrot.slane %v41, 4
    %v43 = vadd.f32 %v41, %v42
    %v44 = vrot.slane %v43, 2
    %v45 = vadd.f32 %v43, %v44
    %v46 = vrot.slane %v45, 1
    %v47 = vadd.f32 %v45, %v46
    %s48 = vtos %v47
    %v49 = vstv %s48
    %50 = vst [vmem:[#allocation2] sm:$0xff] %v49
    // Predicated region
    $region10: #{tpu_custom_call.1} parent=1 // pred_check
      _
    $region11: #{tpu_custom_call.1} parent=1 // pred_check_branch
      %52 = sbr.rel (0) target = $region13
    $region12: #{tpu_custom_call.1} parent=1 // pred_region
      %54 = vsyncadd [#allocation3], 0
      %s56 = sshll.u32 [#allocation2], 4
      %s57 = int_to_ptr.vmem [resolvable:$true] %s56
      %s58 = sshll.u32 %s2, 4
      %s59 = int_to_ptr.hbm [resolvable:$true] %s58
      %61 = dma.vmem_to_hbm [thread:$0]  %s57, 128, %s59, [#allocation3]
    $region13: #{tpu_custom_call.1} parent=1 // pred_fallthru
      _
    // Predicated region
    $region14: #{tpu_custom_call.1} parent=1 // pred_check
      _
    $region15: #{tpu_custom_call.1} parent=1 // pred_check_branch
      %63 = sbr.rel (0) target = $region17
    $region16: #{tpu_custom_call.1} parent=1 // pred_region
      %65 = dma.done [#allocation3], 128
    $region17: #{tpu_custom_call.1} parent=1 // pred_fallthru
      _
    %66 = vsyncpa [#allocation3], 1

</llo_original>
